<compile_context>
chip_gen: v6e
topology: v6e:2x2x1
jax: 0.10.0
libtpu: 0.0.40
codegen_flags: <defaults>
</compile_context>

<pallas_src>
import jax
import jax.numpy as jnp
from jax import lax
from jax.experimental import pallas as pl
from jax.experimental.pallas import tpu as pltpu


def policy_kernel(state_ref, u_ref,
                  w1_ref, b1_ref, w2_ref, b2_ref, tri_ref,
                  logp_ref, action_ref, value_ref):
    S = w1_ref.shape[0]           # num_states
    A = tri_ref.shape[0]          # num_actions

    s = state_ref[0]              # scalar int32 state (1-indexed, as in torch)
    u = u_ref[0]                  # scalar uniform in [0, 1) for sampling

    # ---- _encode_state + layer 1: one-hot @ W1 == row gather of W1 ----
    sidx = jnp.clip(s - 1, 0, S - 1)                       # guard OOB gather
    h = jnp.tanh(w1_ref[pl.ds(sidx, 1), :] + b1_ref[...])  # (1, 2H) f32

    # ---- layer 2: fused score|value heads via block-diagonal bf16 weights ----
    out = jnp.dot(h.astype(jnp.bfloat16), w2_ref[...],
                  preferred_element_type=jnp.float32) + b2_ref[...]   # (1, 2A)
    score = out[:, :A]                                     # (1, A)
    value_ref[...] = out[:, A:2 * A]                       # (1, A)

    # ---- softmax / log_softmax over the action axis (dim=1), f32 math ----
    m = jnp.max(score, axis=-1, keepdims=True)
    e = jnp.exp(score - m)
    denom = jnp.sum(e, axis=-1, keepdims=True)
    prob = e * pl.reciprocal(denom, approx=True)           # F.softmax(score)
    logp = (score - m) - jnp.log(denom)                    # F.log_softmax(score)

    # ---- multinomial(prob, 1) via inverse-CDF (no MXU: VPU mul + lane reduce) ----
    # tri[i, j] = 1 if j <= i, precomputed outside the kernel.
    cdf = jnp.sum(tri_ref[...] * prob, axis=-1, keepdims=True)        # (A, 1)
    cnt = jnp.sum((cdf < u).astype(jnp.float32))                       # scalar
    a = jnp.minimum(cnt, A - 1).astype(jnp.int32)          # clamp: cdf[-1] may be < 1.0

    # ---- torch.gather(log_prob, 1, action) -> scalar ----
    lane = lax.broadcasted_iota(jnp.int32, (1, A), 1)
    logp_ref[0] = jnp.sum(jnp.where(lane == a, logp, 0.0))
    action_ref[0] = a


def policy_forward(state, key, packed_params):
    w1, b1, w2, b2, tri = packed_params
    A = tri.shape[0]

    # glue: one uniform draw for the multinomial sample (sampling math is in-kernel)
    u = jax.random.uniform(key, (1,), dtype=jnp.float32)
    state_arr = jnp.asarray([state], dtype=jnp.int32)

    vmem = pl.BlockSpec(memory_space=pltpu.MemorySpace.VMEM)
    smem = pl.BlockSpec(memory_space=pltpu.MemorySpace.SMEM)

    logp, action, value = pl.pallas_call(
        policy_kernel,
        out_shape=(
            jax.ShapeDtypeStruct((1,), jnp.float32),     # gathered log_prob (SMEM scalar)
            jax.ShapeDtypeStruct((1,), jnp.int32),       # sampled action     (SMEM scalar)
            jax.ShapeDtypeStruct((1, A), jnp.float32),   # value head output
        ),
        in_specs=[smem, smem, vmem, vmem, vmem, vmem, vmem],
        out_specs=(smem, smem, vmem),
    )(state_arr, u, w1, b1, w2, b2, tri)

    # mirror `return (log_prob, action.data[0, 0], value)`
    return logp.reshape(1, 1), action[0], value


def make_params(key, num_states, hidden_dim, num_actions):
    """Per-head params in (in_features, out_features) layout (== torch W^T)."""
    ks = jax.random.split(key, 8)
    scale = 0.1
    ws1 = scale * jax.random.normal(ks[0], (num_states, hidden_dim), jnp.float32)
    bs1 = scale * jax.random.normal(ks[1], (1, hidden_dim), jnp.float32)
    ws2 = scale * jax.random.normal(ks[2], (hidden_dim, num_actions), jnp.float32)
    bs2 = scale * jax.random.normal(ks[3], (1, num_actions), jnp.float32)
    wv1 = scale * jax.random.normal(ks[4], (num_states, hidden_dim), jnp.float32)
    bv1 = scale * jax.random.normal(ks[5], (1, hidden_dim), jnp.float32)
    wv2 = scale * jax.random.normal(ks[6], (hidden_dim, num_actions), jnp.float32)
    bv2 = scale * jax.random.normal(ks[7], (1, num_actions), jnp.float32)
    return (ws1, bs1, ws2, bs2, wv1, bv1, wv2, bv2)


def pack_params(params):
    """One-time packing (outside the kernel): fuse both heads."""
    ws1, bs1, ws2, bs2, wv1, bv1, wv2, bv2 = params
    H, A = ws2.shape
    w1 = jnp.concatenate([ws1, wv1], axis=1)                 # (S, 2H)  f32 (gather path)
    b1 = jnp.concatenate([bs1, bv1], axis=1)                 # (1, 2H)  f32
    w2 = jnp.zeros((2 * H, 2 * A), jnp.float32)
    w2 = w2.at[:H, :A].set(ws2)
    w2 = w2.at[H:, A:].set(wv2)
    w2 = w2.astype(jnp.bfloat16)                             # (2H, 2A) bf16 for MXU
    b2 = jnp.concatenate([bs2, bv2], axis=1)                 # (1, 2A)  f32
    tri = jnp.tril(jnp.ones((A, A), jnp.float32))            # cdf[i] = sum_{j<=i} p_j
    return (w1, b1, w2, b2, tri)


if __name__ == "__main__":
    num_states, hidden_dim, num_actions = 16, 32, 8

    key = jax.random.PRNGKey(0)
    pkey, skey = jax.random.split(key)
    params = make_params(pkey, num_states, hidden_dim, num_actions)
    packed = pack_params(params)

    state = 3   # integer state in [1, num_states], as the torch code indexes eye[state-1]

    log_prob, action, value = policy_forward(state, skey, packed)
    jax.block_until_ready((log_prob, action, value))

    assert log_prob.shape == (1, 1)
    assert value.shape == (1, num_actions)
    assert 0 <= int(action) < num_actions
    # log_prob must be <= 0 (log probability of the sampled action)
    assert float(log_prob[0, 0]) <= 0.0

    print("KERNEL_OK")
</pallas_src>

<mosaic_0001>
module attributes {stable_mosaic.version = 11 : i64} {
  func.func @policy_kernel(%arg0: memref<1xi32, #tpu.memory_space<smem>>, %arg1: memref<1xf32, #tpu.memory_space<smem>>, %arg2: memref<16x64xf32, #tpu.memory_space<vmem>>, %arg3: memref<1x64xf32, #tpu.memory_space<vmem>>, %arg4: memref<64x16xbf16, #tpu.memory_space<vmem>>, %arg5: memref<1x16xf32, #tpu.memory_space<vmem>>, %arg6: memref<8x8xf32, #tpu.memory_space<vmem>>, %arg7: memref<1xf32, #tpu.memory_space<smem>>, %arg8: memref<1xi32, #tpu.memory_space<smem>>, %arg9: memref<1x8xf32, #tpu.memory_space<vmem>>) attributes {dimension_semantics = [], scalar_prefetch = 0 : i64, scratch_operands = 0 : i64, tpu.core_type = #tpu.core_type<tc>} {
    %c0 = arith.constant 0 : index
    %0 = memref.load %arg0[%c0] : memref<1xi32, #tpu.memory_space<smem>>
    %c0_0 = arith.constant 0 : index
    %1 = memref.load %arg1[%c0_0] : memref<1xf32, #tpu.memory_space<smem>>
    %c1_i32 = arith.constant 1 : i32
    %2 = arith.subi %0, %c1_i32 : i32
    %c0_i32 = arith.constant 0 : i32
    %c15_i32 = arith.constant 15 : i32
    %3 = arith.maxsi %c0_i32, %2 : i32
    %4 = arith.minsi %c15_i32, %3 : i32
    %5 = arith.index_cast %4 : i32 to index
    %c0_1 = arith.constant 0 : index
    %6 = vector.load %arg2[%5, %c0_1] : memref<16x64xf32, #tpu.memory_space<vmem>>, vector<1x64xf32>
    %c0_2 = arith.constant 0 : index
    %c0_3 = arith.constant 0 : index
    %7 = vector.load %arg3[%c0_2, %c0_3] : memref<1x64xf32, #tpu.memory_space<vmem>>, vector<1x64xf32>
    %8 = arith.addf %6, %7 : vector<1x64xf32>
    %9 = math.tanh %8 : vector<1x64xf32>
    %10 = arith.truncf %9 : vector<1x64xf32> to vector<1x64xbf16>
    %c0_4 = arith.constant 0 : index
    %c0_5 = arith.constant 0 : index
    %11 = vector.load %arg4[%c0_4, %c0_5] : memref<64x16xbf16, #tpu.memory_space<vmem>>, vector<64x16xbf16>
    %cst = arith.constant dense<0.000000e+00> : vector<1x16xf32>
    %12 = tpu.matmul %10, %11, %cst {dimension_numbers = #tpu.dot_dimension_numbers<[1], [0], [0], [1], [0, 0, 1, 1], [], []>} : vector<1x64xbf16>, vector<64x16xbf16>, vector<1x16xf32> -> vector<1x16xf32>
    %c0_6 = arith.constant 0 : index
    %c0_7 = arith.constant 0 : index
    %13 = vector.load %arg5[%c0_6, %c0_7] : memref<1x16xf32, #tpu.memory_space<vmem>>, vector<1x16xf32>
    %14 = arith.addf %12, %13 : vector<1x16xf32>
    %15 = vector.extract_strided_slice %14 {offsets = [0, 0], sizes = [1, 8], strides = [1, 1]} : vector<1x16xf32> to vector<1x8xf32>
    %16 = vector.extract_strided_slice %14 {offsets = [0, 8], sizes = [1, 8], strides = [1, 1]} : vector<1x16xf32> to vector<1x8xf32>
    %c0_8 = arith.constant 0 : index
    %c0_9 = arith.constant 0 : index
    %17 = vector.load %arg9[%c0_8, %c0_9] : memref<1x8xf32, #tpu.memory_space<vmem>>, vector<1x8xf32>
    tpu.vector_store %arg9[%c0_8, %c0_9], %16 {strides = array<i32>} : memref<1x8xf32, #tpu.memory_space<vmem>>, vector<1x8xf32>,
    %cst_10 = arith.constant dense<0xFF800000> : vector<1xf32>
    %18 = vector.multi_reduction <maximumf>, %15, %cst_10 [1] : vector<1x8xf32> to vector<1xf32>
    %19 = vector.shape_cast %18 : vector<1xf32> to vector<1x1xf32>
    %20 = vector.broadcast %19 : vector<1x1xf32> to vector<1x8xf32>
    %21 = arith.subf %15, %20 : vector<1x8xf32>
    %22 = math.exp %21 : vector<1x8xf32>
    %cst_11 = arith.constant dense<0.000000e+00> : vector<1xf32>
    %23 = vector.multi_reduction <add>, %22, %cst_11 [1] : vector<1x8xf32> to vector<1xf32>
    %24 = vector.shape_cast %23 : vector<1xf32> to vector<1x1xf32>
    %25 = tpu.reciprocal %24 {approx = true} : vector<1x1xf32> -> vector<1x1xf32>
    %26 = vector.broadcast %25 : vector<1x1xf32> to vector<1x8xf32>
    %27 = arith.mulf %22, %26 : vector<1x8xf32>
    %28 = vector.broadcast %19 : vector<1x1xf32> to vector<1x8xf32>
    %29 = arith.subf %15, %28 : vector<1x8xf32>
    %30 = math.log %24 : vector<1x1xf32>
    %31 = vector.broadcast %30 : vector<1x1xf32> to vector<1x8xf32>
    %32 = arith.subf %29, %31 : vector<1x8xf32>
    %c0_12 = arith.constant 0 : index
    %c0_13 = arith.constant 0 : index
    %33 = vector.load %arg6[%c0_12, %c0_13] : memref<8x8xf32, #tpu.memory_space<vmem>>, vector<8x8xf32>
    %34 = vector.broadcast %27 : vector<1x8xf32> to vector<8x8xf32>
    %35 = arith.mulf %33, %34 : vector<8x8xf32>
    %cst_14 = arith.constant dense<0.000000e+00> : vector<8xf32>
    %36 = vector.multi_reduction <add>, %35, %cst_14 [1] : vector<8x8xf32> to vector<8xf32>
    %37 = vector.shape_cast %36 : vector<8xf32> to vector<8x1xf32>
    %38 = vector.broadcast %1 : f32 to vector<8x1xf32>
    %39 = arith.cmpf olt, %37, %38 : vector<8x1xf32>
    %40 = arith.extui %39 : vector<8x1xi1> to vector<8x1xi32>
    %41 = arith.sitofp %40 : vector<8x1xi32> to vector<8x1xf32>
    %42 = vector.shape_cast %41 : vector<8x1xf32> to vector<1x8x1xf32>
    %cst_15 = arith.constant dense<0.000000e+00> : vector<1xf32>
    %43 = vector.multi_reduction <add>, %42, %cst_15 [1, 2] : vector<1x8x1xf32> to vector<1xf32>
    %44 = vector.shape_cast %43 : vector<1xf32> to vector<1x1x1xf32>
    %45 = vector.extract %44[0, 0, 0] : f32 from vector<1x1x1xf32>
    %cst_16 = arith.constant 7.000000e+00 : f32
    %46 = arith.minimumf %45, %cst_16 : f32
    %47 = arith.fptosi %46 : f32 to i32
    %48 = tpu.iota {dimensions = array<i32: 1>} : vector<1x8xi32>
    %49 = vector.broadcast %47 : i32 to vector<1x8xi32>
    %50 = arith.cmpi eq, %48, %49 : vector<1x8xi32>
    %cst_17 = arith.constant 0.000000e+00 : f32
    %51 = vector.broadcast %cst_17 : f32 to vector<1x8xf32>
    %52 = arith.select %50, %32, %51 : vector<1x8xi1>, vector<1x8xf32>
    %53 = vector.shape_cast %52 : vector<1x8xf32> to vector<1x1x8xf32>
    %cst_18 = arith.constant dense<0.000000e+00> : vector<1xf32>
    %54 = vector.multi_reduction <add>, %53, %cst_18 [1, 2] : vector<1x1x8xf32> to vector<1xf32>
    %55 = vector.shape_cast %54 : vector<1xf32> to vector<1x1x1xf32>
    %56 = vector.extract %55[0, 0, 0] : f32 from vector<1x1x1xf32>
    %c0_19 = arith.constant 0 : index
    %57 = memref.load %arg7[%c0_19] : memref<1xf32, #tpu.memory_space<smem>>
    memref.store %56, %arg7[%c0_19] : memref<1xf32, #tpu.memory_space<smem>>
    %c0_20 = arith.constant 0 : index
    %58 = memref.load %arg8[%c0_20] : memref<1xi32, #tpu.memory_space<smem>>
    memref.store %47, %arg8[%c0_20] : memref<1xi32, #tpu.memory_space<smem>>
    return
  }
}

</mosaic_0001>

<llo_original>
// kernel: tpu_custom_call.1
$region0: #{tpu_custom_call.1}
  #allocation0 [shape = 'u32[]', space=smem, size = 0x4, offset = 0x4, fixed_abs, tag = 'smem constant byte address 0x4 - core index']
  #allocation1 [shape = 'u32[144,128]{1,0:T(1,128)}', space=vmem, size = 0x12000, scoped, tag = 'internal scratch']
  #allocation2 [shape = 's32[1]{0:T(128)S(6)}', space=smem, size = 0x200, scoped, tag = 'scoped memory for tpu_custom_call.1']
  #allocation3 [shape = 'f32[1]{0:T(128)S(6)}', space=smem, size = 0x200, scoped, tag = 'scoped memory for tpu_custom_call.1']
  %s0 = inlined_call_operand.<no memory space> [shape: s32[1], index: 0, kind: input, shape index: {}]
  %s1 = inlined_call_operand.<no memory space> [shape: f32[1], index: 1, kind: input, shape index: {}]
  %s2 = inlined_call_operand.vmem [shape: f32[16,64], index: 2, kind: input, shape index: {}]
  %s3 = inlined_call_operand.vmem [shape: f32[1,64], index: 3, kind: input, shape index: {}]
  %s4 = inlined_call_operand.vmem [shape: bf16[64,16], index: 4, kind: input, shape index: {}]
  %s5 = inlined_call_operand.vmem [shape: f32[1,16], index: 5, kind: input, shape index: {}]
  %s6 = inlined_call_operand.vmem [shape: f32[8,8], index: 6, kind: input, shape index: {}]
  %s7 = inlined_call_operand.hbm [shape: f32[1], index: 7, kind: output, shape index: {0}]
  %s8 = inlined_call_operand.hbm [shape: s32[1], index: 8, kind: output, shape index: {1}]
  %s9 = inlined_call_operand.hbm [shape: f32[1,8], index: 9, kind: output, shape index: {2}]
  %10 = xla_tuple %s7, %s8, %s9
  %s11 = sld [smem:[#allocation0]]
  $region54: #{tpu_custom_call.1} parent=0
    _
  %s13 = ssub.s32 1, %s11
  %s14 = scalar_select 0, %s13, %s11
  %15 = sst [smem:[#allocation2]] %s0
  %16 = sst [smem:[#allocation3]] %s1
  $region1: #{tpu_custom_call.1} parent=0
    #allocation4 [shape = 'u8[512]{0}', space=smem, size = 0x200, scoped, tag = 'output window, operand 0, single buffered']
    #allocation5 [shape = 's32[1]{0}', space=sflag, size = 0x4, scoped, tag = 'scoped memory for tpu_custom_call.1']
    #allocation6 [shape = 's32[1]{0}', space=sflag, size = 0x4, scoped, tag = 'scoped memory for tpu_custom_call.1']
    #allocation7 [shape = 'u8[512]{0}', space=smem, size = 0x200, scoped, tag = 'output window, operand 1, single buffered']
    #allocation8 [shape = 's32[1]{0}', space=sflag, size = 0x4, scoped, tag = 'scoped memory for tpu_custom_call.1']
    #allocation9 [shape = 'u8[512]{0}', space=vmem, size = 0x400, scoped, tag = 'output window, operand 2, single buffered']
    %17 = vsyncpa [#allocation6], 0
    %18 = vsyncpa [#allocation8], 0
    %19 = vsyncpa [#allocation5], 0
    // Predicated region
    $region2: #{tpu_custom_call.1} parent=1 // pred_check
      _
    $region3: #{tpu_custom_call.1} parent=1 // pred_check_branch
      %21 = sbr.rel (0) target = $region5
    $region4: #{tpu_custom_call.1} parent=1 // pred_region
      _
    $region5: #{tpu_custom_call.1} parent=1 // pred_fallthru
      _
    // Predicated region
    $region6: #{tpu_custom_call.1} parent=1 // pred_check
      _
    $region7: #{tpu_custom_call.1} parent=1 // pred_check_branch
      %23 = sbr.rel (0) target = $region9
    $region8: #{tpu_custom_call.1} parent=1 // pred_region
      _
    $region9: #{tpu_custom_call.1} parent=1 // pred_fallthru
      _
    // Predicated region
    $region10: #{tpu_custom_call.1} parent=1 // pred_check
      _
    $region11: #{tpu_custom_call.1} parent=1 // pred_check_branch
      %25 = sbr.rel (0) target = $region13
    $region12: #{tpu_custom_call.1} parent=1 // pred_region
      _
    $region13: #{tpu_custom_call.1} parent=1 // pred_fallthru
      _
    // Predicated region
    $region14: #{tpu_custom_call.1} parent=1 // pred_check
      _
    $region15: #{tpu_custom_call.1} parent=1 // pred_check_branch
      %27 = sbr.rel (0) target = $region17
    $region16: #{tpu_custom_call.1} parent=1 // pred_region
      _
    $region17: #{tpu_custom_call.1} parent=1 // pred_fallthru
      _
    // Predicated region
    $region18: #{tpu_custom_call.1} parent=1 // pred_check
      _
    $region19: #{tpu_custom_call.1} parent=1 // pred_check_branch
      %29 = sbr.rel (0) target = $region21
    $region20: #{tpu_custom_call.1} parent=1 // pred_region
      _
    $region21: #{tpu_custom_call.1} parent=1 // pred_fallthru
      _
    // Predicated region
    $region22: #{tpu_custom_call.1} parent=1 // pred_check
      _
    $region23: #{tpu_custom_call.1} parent=1 // pred_check_branch
      %31 = sbr.rel (0) target = $region25
    $region24: #{tpu_custom_call.1} parent=1 // pred_region
      _
    $region25: #{tpu_custom_call.1} parent=1 // pred_fallthru
      _
    // Predicated region
    $region26: #{tpu_custom_call.1} parent=1 // pred_check
      _
    $region27: #{tpu_custom_call.1} parent=1 // pred_check_branch
      %33 = sbr.rel (0) target = $region29
    $region28: #{tpu_custom_call.1} parent=1 // pred_region
      _
    $region29: #{tpu_custom_call.1} parent=1 // pred_fallthru
      _
    %s35 = sld [smem:[#allocation2]]
    %s36 = sld [smem:[#allocation3]]
    %s37 = ssub.s32 %s35, 1
    %p38 = scmp.gt.s32.totalorder %s37, 0
    %s39 = scalar_select %p38, %s37, 0
    %p40 = scmp.lt.s32.totalorder %s39, 15
    %s41 = scalar_select %p40, %s39, 15
    %s42 = scalar_lea.vmem %s2, %s41
    %v43 = vld [vmem:[%s42] sm:$0x1]
    %v44 = vld [vmem:[%s3] sm:$0x1]
    %v45 = vadd.f32 %v43, %v44
    %v46 = vtanh.pop %v45
    %v47 = vpack.c.bf16 %v46, %v46
    %v48 = vld [vmem:[%s4] sm:$0xf]
    %v49 = vld [vmem:[%s4 + $0x4] sm:$0xf]
    %v50 = vld [vmem:[%s4 + $0x8] sm:$0xf]
    %v51 = vld [vmem:[%s4 + $0xc] sm:$0xf]
    %v52 = vld [vmem:[%s4 + $0x10] sm:$0xf]
    %v53 = vld [vmem:[%s4 + $0x14] sm:$0xf]
    %v54 = vld [vmem:[%s4 + $0x18] sm:$0xf]
    %v55 = vld [vmem:[%s4 + $0x1c] sm:$0xf]
    %v56 = vld [vmem:[%s5] sm:$0x1]
    %v65 = vunpack.c.l.b16 %v48
    %v66 = vunpack.c.l.b16 %v49
    %v67 = vunpack.c.l.b16 %v50
    %v68 = vunpack.c.l.b16 %v51
    %v69 = vunpack.c.l.b16 %v52
    %v70 = vunpack.c.l.b16 %v53
    %v71 = vunpack.c.l.b16 %v54
    %v72 = vunpack.c.l.b16 %v55
    %v73 = vpack.c.b16 %v66, %v65
    %v74 = vpack.c.b16 %v68, %v67
    %v75 = vpack.c.b16 %v70, %v69
    %v76 = vpack.c.b16 %v72, %v71
    %vm81 = vcmask 523264
    %v83 = vsel %vm81, %v47, 0
    %85 = vmatprep.subr.bf16.mxu0 0
    %86 = vmatpush1.bf16.msra.mxu0 0
    %87 = vmatprep.subr.bf16.mxu0 0
    %88 = vmatpush1.bf16.msra.mxu0 0
    %89 = vmatprep.subr.bf16.mxu0 0
    %90 = vmatpush1.bf16.msra.mxu0 0
    %91 = vmatprep.subr.bf16.mxu0 0
    %92 = vmatpush1.bf16.msra.mxu0 0
    %93 = vmatprep.subr.bf16.mxu0 0
    %94 = vmatpush1.bf16.msra.mxu0 %v76
    %95 = vmatprep.subr.bf16.mxu0 0
    %96 = vmatpush1.bf16.msra.mxu0 %v75
    %97 = vmatprep.subr.bf16.mxu0 0
    %98 = vmatpush1.bf16.msra.mxu0 %v74
    %99 = vmatprep.subr.bf16.mxu0 0
    %100 = vmatpush1.bf16.msra.mxu0 %v73
    %101 = vmatprep.subr.bf16.mxu0 0
    %102 = vmatpush2.bf16.msra.mxu0 0
    %103 = vmatprep.subr.bf16.mxu0 0
    %104 = vmatpush2.bf16.msra.mxu0 0
    %105 = vmatprep.subr.bf16.mxu0 0
    %106 = vmatpush2.bf16.msra.mxu0 0
    %107 = vmatprep.subr.bf16.mxu0 0
    %108 = vmatpush2.bf16.msra.mxu0 0
    %109 = vmatprep.subr.bf16.mxu0 0
    %110 = vmatpush2.bf16.msra.mxu0 0
    %111 = vmatprep.subr.bf16.mxu0 0
    %112 = vmatpush2.bf16.msra.mxu0 0
    %113 = vmatprep.subr.bf16.mxu0 0
    %114 = vmatpush2.bf16.msra.mxu0 0
    %115 = vmatprep.subr.bf16.mxu0 0
    %116 = vmatpush2.bf16.msra.mxu0 0
    %117 = vmatprep.mubr.bf16.mxu0 0
    %118 = vmatmul.mubr.bf16.gmra.mxu0 %v83
    %v119 = vpop.f32.mrf.mxu0
    %v120 = vadd.f32 %v56, %v119
    %v121 = vpop.f32.mrf.mxu0
    %v122 = vpop.f32.mrf.mxu0
    %v123 = vpop.f32.mrf.mxu0
    %124 = vdwg.mxu0
    %126 = vrot.lane.b32.xlu0 %v120, 120
    %v127 = vpop.permute.xlu0 %126
    %vm129 = vcmask 57344
    %130 = vst.msk [vmem:[#allocation9] sm:$0x1] %vm129, %v127
    %v131 = vsel %vm129, %v120, -inf
    %132 = vmax.xlane.f32.xlu0 %v131
    %v133 = vpop.xlane.xlu0 %132
    %v134 = vsub.f32 %v120, %v133
    %v135 = vmul.f32 %v134, 1.442695
    %v136 = vpow.pop %v135
    %v137 = vsel %vm129, %v136, 0.0
    %138 = vadd.xlane.f32.xlu0 %v137
    %v139 = vpop.xlane.xlu0 %138
    %v140 = vrcp.pop %v139
    %v141 = vmul.f32 %v136, %v140
    %v142 = vlog2.pop %v139
    %v143 = vmul.f32 %v142, 0.6931472
    %v144 = vsub.f32 %v134, %v143
    %v145 = vld [vmem:[%s6] sm:$0xff]
    %v146 = vlaneseq
    %v147 = vshrl.u32 %v146, 7
    %v148 = vsub.s32 0, %v147
    %v149 = vrot.slane %v141, %v148
    %v150 = vmul.f32 %v145, %v149
    %vm151 = vcmask 64512
    %v152 = vsel %vm151, %v150, 0.0
    %153 = vadd.xlane.f32.xlu0 %v152
    %v154 = vpop.xlane.xlu0 %153
    %v155 = vstv %s36
    %vm156 = vcmp.lt.f32.partialorder %v154, %v155
    %v157 = vsel %vm156, 1, 0
    %v158 = vcvt.s32.f32 %v157
    %vm159 = vcmask 7168
    %v160 = vsel %vm159, %v158, 0.0
    %161 = vadd.xlane.f32.xlu0 %v160
    %v162 = vpop.xlane.xlu0 %161
    %v163 = vrot.slane %v162, 4
    %v164 = vadd.f32 %v162, %v163
    %v165 = vrot.slane %v164, 2
    %v166 = vadd.f32 %v164, %v165
    %v167 = vrot.slane %v166, 1
    %v168 = vadd.f32 %v166, %v167
    %s169 = vtos %v168
    %s170 = smin.f32 %s169, 7.0
    %s171 = scvt.f32.s32.to.zero.pseudo %s170
    %v172 = vlaneseq
    %v173 = vand.u32 %v172, 127
    %v174 = vstv %s171
    %vm175 = vcmp.eq.s32.totalorder %v173, %v174
    %v176 = vsel %vm175, %v144, 0.0
    %v177 = vsel %vm129, %v176, 0.0
    %178 = vadd.xlane.f32.xlu0 %v177
    %v179 = vpop.xlane.xlu0 %178
    %v180 = vrot.slane %v179, 4
    %v181 = vadd.f32 %v179, %v180
    %v182 = vrot.slane %v181, 2
    %v183 = vadd.f32 %v181, %v182
    %v184 = vrot.slane %v183, 1
    %v185 = vadd.f32 %v183, %v184
    %s186 = vtos %v185
    %s187 = scalar_lea.smem [#allocation4], 0
    %188 = sst [smem:[%s187]] %s186
    %s189 = scalar_lea.smem [#allocation7], 0
    %190 = sst [smem:[%s189]] %s171
    // Predicated region
    $region30: #{tpu_custom_call.1} parent=1 // pred_check
      _
    $region31: #{tpu_custom_call.1} parent=1 // pred_check_branch
      %192 = sbr.rel (0) target = $region33
    $region32: #{tpu_custom_call.1} parent=1 // pred_region
      %s194 = ssub.s32 16, 16
      %195 = vsyncadd [#allocation6], %s194
      %198 = dma.smem_to_hbm [#allocation4], 16, %s7, [#allocation6]
    $region33: #{tpu_custom_call.1} parent=1 // pred_fallthru
      _
    // Predicated region
    $region34: #{tpu_custom_call.1} parent=1 // pred_check
      _
    $region35: #{tpu_custom_call.1} parent=1 // pred_check_branch
      %200 = sbr.rel (0) target = $region37
    $region36: #{tpu_custom_call.1} parent=1 // pred_region
      %s202 = ssub.s32 16, 16
      %203 = vsyncadd [#allocation8], %s202
      %206 = dma.smem_to_hbm [#allocation7], 16, %s8, [#allocation8]
    $region37: #{tpu_custom_call.1} parent=1 // pred_fallthru
      _
    // Predicated region
    $region38: #{tpu_custom_call.1} parent=1 // pred_check
      _
    $region39: #{tpu_custom_call.1} parent=1 // pred_check_branch
      %208 = sbr.rel (0) target = $region41
    $region40: #{tpu_custom_call.1} parent=1 // pred_region
      %s210 = ssub.s32 16, 16
      %211 = vsyncadd [#allocation5], %s210
      %s213 = sshll.u32 [#allocation9], 4
      %s214 = int_to_ptr.vmem [resolvable:$true] %s213
      %216 = dma.vmem_to_hbm [thread:$0]  %s214, 16, %s9, [#allocation5]
    $region41: #{tpu_custom_call.1} parent=1 // pred_fallthru
      _
    // Predicated region
    $region42: #{tpu_custom_call.1} parent=1 // pred_check
      _
    $region43: #{tpu_custom_call.1} parent=1 // pred_check_branch
      %218 = sbr.rel (0) target = $region45
    $region44: #{tpu_custom_call.1} parent=1 // pred_region
      %219 = dma.done [#allocation6], 16
    $region45: #{tpu_custom_call.1} parent=1 // pred_fallthru
      _
    // Predicated region
    $region46: #{tpu_custom_call.1} parent=1 // pred_check
      _
    $region47: #{tpu_custom_call.1} parent=1 // pred_check_branch
      %221 = sbr.rel (0) target = $region49
    $region48: #{tpu_custom_call.1} parent=1 // pred_region
      %222 = dma.done [#allocation8], 16
    $region49: #{tpu_custom_call.1} parent=1 // pred_fallthru
      _
    // Predicated region
    $region50: #{tpu_custom_call.1} parent=1 // pred_check
      _
    $region51: #{tpu_custom_call.1} parent=1 // pred_check_branch
      %224 = sbr.rel (0) target = $region53
    $region52: #{tpu_custom_call.1} parent=1 // pred_region
      %225 = dma.done [#allocation5], 16
    $region53: #{tpu_custom_call.1} parent=1 // pred_fallthru
      _
    %226 = sfence
    %227 = vsyncpa [#allocation5], 1
    %228 = vsyncpa [#allocation6], 1
    %229 = vsyncpa [#allocation8], 1

</llo_original>
